<compile_context>
chip_gen: v7x
topology: tpu7x:2x2x1
jax: 0.10.0
libtpu: 0.0.40
codegen_flags: <defaults>
</compile_context>

<pallas_src>
import functools

import jax
import jax.numpy as jnp
import numpy as np
from jax.experimental import pallas as pl
from jax.experimental.pallas import tpu as pltpu


# ----------------------------- Pallas kernel -------------------------------

def _angular_npair_kernel(batch_ref, o_ref, *, B, tan2, lam, l2_weight):
    eps2 = 1e-24  # (F.normalize default eps)**2

    # Strided sublane loads: anchors = even rows, positives = odd rows.
    # TODO(synk): confirm via pl.lower_as_mlir that this stays a strided vld at
    # large NB; otherwise deinterleave the resident tile with sublane masks.
    a = batch_ref[pl.ds(0, B, stride=2), :].astype(jnp.float32)   # (B, D)
    p = batch_ref[pl.ds(1, B, stride=2), :].astype(jnp.float32)   # (B, D)

    # Single sum-of-squares pass per half of the batch; reused for both the
    # normalization factors (rsqrt, EUP) and the L2-norm regularizer (sqrt).
    ss_a = jnp.sum(a * a, axis=-1, keepdims=True)                 # (B, 1)
    ss_p = jnp.sum(p * p, axis=-1, keepdims=True)                 # (B, 1)
    inv_a = jax.lax.rsqrt(jnp.maximum(ss_a, eps2))   # == 1 / max(||a||, eps)
    inv_p = jax.lax.rsqrt(jnp.maximum(ss_p, eps2))
    na = a * inv_a                                                # (B, D)
    npos = p * inv_p                                              # (B, D)

    # Shared f32 row dot <a_i, p_i>: n-pair diagonal AND (rescaled) angular
    # is_term2 — one (B,D) multiply + XLU reduce instead of two.
    ap_diag = jnp.sum(a * p, axis=-1, keepdims=True)              # (B, 1)

    # ---- angular term ----
    # negatives = roll(positives, -1)  =>  normalized negative i = npos[(i+1)%B].
    # XLU sublane rotate (shift=B-1 == -1 mod B) replaces the old (B,B) matmul
    # plus iota shift-mask; is_term1 is then a plain row dot on the VPU.
    np_shift = pltpu.roll(npos, shift=B - 1, axis=0)  # np_shift[i]=npos[(i+1)%B]
    is_term1 = 4.0 * tan2 * jnp.sum((na + npos) * np_shift, axis=-1,
                                    keepdims=True)                # (B, 1)
    is_term2 = 2.0 * (1.0 + tan2) * ap_diag * inv_a * inv_p       # <na_i, np_i>
    x_ang = is_term1 - is_term2                                   # (B, 1)
    # log(exp(x) + 1) == softplus(x); stable form, single EUP exp per row.
    angular_loss = jnp.mean(jnp.maximum(x_ang, 0.0)
                            + jnp.log1p(jnp.exp(-jnp.abs(x_ang))))

    # ---- n-pair term ----
    # inner[i, j] = <a_i, n_j> - <a_i, p_i> with n_j = p_{(j+1)%B}; the row-sum
    # of exp() is invariant under that column permutation, so a @ p^T suffices.
    # bf16 MXU operands (f32 accumulate): one MXU pass instead of 3+ f32 passes.
    ap = jax.lax.dot_general(a.astype(jnp.bfloat16), p.astype(jnp.bfloat16),
                             (((1,), (1,)), ((), ())),
                             preferred_element_type=jnp.float32)  # (B, B)
    inner = jnp.clip(ap - ap_diag, -50.0, 50.0)
    row_sum = jnp.sum(jnp.exp(inner), axis=1, keepdims=True)      # (B, 1)
    npair_loss = jnp.mean(jnp.log(row_sum + 1.0))

    # ---- L2 embedding-norm regularizer over the full batch ----
    # anchors ∪ positives is exactly the batch (even + odd rows): reuse ss.
    l2_term = (jnp.sum(jnp.sqrt(ss_a)) + jnp.sum(jnp.sqrt(ss_p))) / (2.0 * B)

    loss = npair_loss + lam * angular_loss + l2_weight * l2_term
    o_ref[0, 0] = loss                                            # SMEM scalar


def angular_npair_loss(batch, *, tan_angular_margin, lam, l2_weight):
    nb, d = batch.shape
    assert nb % 2 == 0, "npair mining needs (anchor, positive) row pairs"
    b = nb // 2
    # Layout: NB multiple of 16 and D multiple of 128 for f32 (NB multiple of
    # 32 if a bf16 batch is fed in, so the stride-2 split stays tile-aligned).
    elt = jnp.dtype(batch.dtype).itemsize
    # Scoped-VMEM budget from the actual resident footprint (v5e defaults to
    # only 16 MiB scoped VMEM; be explicit so larger NB*D never hits that wall).
    footprint = (nb * d * elt            # resident batch block
                 + 7 * b * d * 4         # a, p, na, npos, u, np_shift, temps
                 + 2 * b * d * 2         # bf16 MXU operands
                 + 2 * b * b * 4         # ap + exp temporaries
                 + 32 * b * 4)           # (B,1) row vectors
    vmem_limit = int(min(100 * 1024 * 1024, max(4 * 1024 * 1024, 4 * footprint)))

    kernel = functools.partial(
        _angular_npair_kernel,
        B=b,
        tan2=float(tan_angular_margin) ** 2,
        lam=float(lam),
        l2_weight=float(l2_weight),
    )
    out = pl.pallas_call(
        kernel,
        out_shape=jax.ShapeDtypeStruct((1, 1), jnp.float32),
        in_specs=[pl.BlockSpec(memory_space=pltpu.MemorySpace.VMEM)],
        out_specs=pl.BlockSpec(memory_space=pltpu.MemorySpace.SMEM),
        compiler_params=pltpu.CompilerParams(vmem_limit_bytes=vmem_limit),
    )(batch)
    return out[0, 0]


# -------------------------- glue: npair batchminer --------------------------

def npair_batchminer(labels):
    """Deterministic 'npair' miner: labels come in (anchor, positive) pairs;
    the negative for each anchor is the positive of the next class."""
    labels = np.asarray(labels)
    nb = labels.shape[0]
    anchors = np.arange(0, nb, 2)
    positives = np.arange(1, nb, 2)
    negatives = np.roll(positives, -1)        # sample from a different class
    return anchors, positives, negatives


# pure-JAX f32 reference of the PyTorch forward (validates in-kernel algebra)
def reference_loss(batch, a, p, n, tan_margin, lam, l2_weight):
    def norm(x):
        return x / jnp.maximum(
            jnp.sqrt(jnp.sum(x * x, axis=-1, keepdims=True)), 1e-12)
    na, npos, nneg = norm(a), norm(p), norm(n)
    t2 = tan_margin ** 2
    is1 = 4 * t2 * jnp.einsum('bd,bd->b', na + npos, nneg)[:, None]
    is2 = 2 * (1 + t2) * jnp.einsum('bd,bd->b', na, npos)[:, None]
    ang = jnp.mean(jnp.log(jnp.sum(jnp.exp(is1 - is2), axis=1) + 1))
    diff = n[None, :, :] - p[:, None, :]                         # (B, B, D)
    inn = jnp.clip(jnp.einsum('bd,bjd->bj', a, diff), -50, 50)
    npair = jnp.mean(jnp.log(jnp.sum(jnp.exp(inn), axis=1) + 1))
    l2 = jnp.mean(jnp.sqrt(jnp.sum(batch * batch, axis=1)))
    return npair + lam * ang + l2_weight * l2


# ---------------------------------- main ------------------------------------

if __name__ == "__main__":
    # hyperparameters (deterministic, matching typical args defaults)
    loss_angular_alpha = 45.0
    loss_angular_npair_ang_weight = 2.0
    loss_angular_npair_l2 = 0.005
    tan_angular_margin = np.tan(np.pi / 180.0 * loss_angular_alpha)

    # small deterministic inputs: 16 embeddings, dim 128, 8 classes of 2
    NB, D = 16, 128
    key = jax.random.PRNGKey(0)
    batch = jax.random.normal(key, (NB, D), dtype=jnp.float32)
    labels = np.repeat(np.arange(NB // 2), 2)

    # Pallas path: batch is the only input (miner structure fused in-kernel).
    loss = angular_npair_loss(
        batch,
        tan_angular_margin=tan_angular_margin,
        lam=loss_angular_npair_ang_weight,
        l2_weight=loss_angular_npair_l2,
    )
    loss = jax.block_until_ready(loss)

    # Reference path: explicit gathers following the PyTorch module (f32).
    a_idx, p_idx, n_idx = npair_batchminer(labels)
    ref = reference_loss(batch, batch[a_idx], batch[p_idx], batch[n_idx],
                         tan_angular_margin,
                         loss_angular_npair_ang_weight,
                         loss_angular_npair_l2)
    ref = jax.block_until_ready(ref)
    # Tolerance loosened vs a pure-f32 kernel because the n-pair Gram matrix
    # uses bf16 MXU operands (f32 accumulate); errors from a real algebra bug
    # would be orders of magnitude larger.
    assert np.allclose(np.asarray(loss), np.asarray(ref), rtol=3e-2, atol=1e-1), \
        (float(loss), float(ref))

    print("KERNEL_OK")
</pallas_src>

<mosaic_0001>
module attributes {stable_mosaic.version = 11 : i64} {
  func.func @_angular_npair_kernel(%arg0: memref<16x128xf32, #tpu.memory_space<vmem>>, %arg1: memref<1x1xf32, #tpu.memory_space<smem>>) attributes {dimension_semantics = [], scalar_prefetch = 0 : i64, scratch_operands = 0 : i64, tpu.core_type = #tpu.core_type<tc>} {
    %c0 = arith.constant 0 : index
    %c0_0 = arith.constant 0 : index
    %0 = tpu.strided_load %arg0[%c0, %c0_0] {strides = array<i32: 2, 1>} : memref<16x128xf32, #tpu.memory_space<vmem>>, vector<8x128xf32>
    %c1 = arith.constant 1 : index
    %c0_1 = arith.constant 0 : index
    %1 = tpu.strided_load %arg0[%c1, %c0_1] {strides = array<i32: 2, 1>} : memref<16x128xf32, #tpu.memory_space<vmem>>, vector<8x128xf32>
    %2 = arith.mulf %0, %0 : vector<8x128xf32>
    %cst = arith.constant dense<0.000000e+00> : vector<8xf32>
    %3 = vector.multi_reduction <add>, %2, %cst [1] : vector<8x128xf32> to vector<8xf32>
    %4 = vector.shape_cast %3 : vector<8xf32> to vector<8x1xf32>
    %5 = arith.mulf %1, %1 : vector<8x128xf32>
    %cst_2 = arith.constant dense<0.000000e+00> : vector<8xf32>
    %6 = vector.multi_reduction <add>, %5, %cst_2 [1] : vector<8x128xf32> to vector<8xf32>
    %7 = vector.shape_cast %6 : vector<8xf32> to vector<8x1xf32>
    %cst_3 = arith.constant 1.000000e-24 : f32
    %8 = vector.broadcast %cst_3 : f32 to vector<8x1xf32>
    %9 = arith.maximumf %4, %8 : vector<8x1xf32>
    %10 = math.rsqrt %9 : vector<8x1xf32>
    %cst_4 = arith.constant 1.000000e-24 : f32
    %11 = vector.broadcast %cst_4 : f32 to vector<8x1xf32>
    %12 = arith.maximumf %7, %11 : vector<8x1xf32>
    %13 = math.rsqrt %12 : vector<8x1xf32>
    %14 = vector.broadcast %10 : vector<8x1xf32> to vector<8x128xf32>
    %15 = arith.mulf %0, %14 : vector<8x128xf32>
    %16 = vector.broadcast %13 : vector<8x1xf32> to vector<8x128xf32>
    %17 = arith.mulf %1, %16 : vector<8x128xf32>
    %18 = arith.mulf %0, %1 : vector<8x128xf32>
    %cst_5 = arith.constant dense<0.000000e+00> : vector<8xf32>
    %19 = vector.multi_reduction <add>, %18, %cst_5 [1] : vector<8x128xf32> to vector<8xf32>
    %20 = vector.shape_cast %19 : vector<8xf32> to vector<8x1xf32>
    %c7_i32 = arith.constant 7 : i32
    %21 = tpu.dynamic_rotate %17 by %c7_i32 dim 0 : vector<8x128xf32>, i32 -> vector<8x128xf32>
    %22 = arith.addf %15, %17 : vector<8x128xf32>
    %23 = arith.mulf %22, %21 : vector<8x128xf32>
    %cst_6 = arith.constant dense<0.000000e+00> : vector<8xf32>
    %24 = vector.multi_reduction <add>, %23, %cst_6 [1] : vector<8x128xf32> to vector<8xf32>
    %25 = vector.shape_cast %24 : vector<8xf32> to vector<8x1xf32>
    %cst_7 = arith.constant 4.000000e+00 : f32
    %26 = vector.broadcast %cst_7 : f32 to vector<8x1xf32>
    %27 = arith.mulf %26, %25 : vector<8x1xf32>
    %cst_8 = arith.constant 4.000000e+00 : f32
    %28 = vector.broadcast %cst_8 : f32 to vector<8x1xf32>
    %29 = arith.mulf %28, %20 : vector<8x1xf32>
    %30 = arith.mulf %29, %10 : vector<8x1xf32>
    %31 = arith.mulf %30, %13 : vector<8x1xf32>
    %32 = arith.subf %27, %31 : vector<8x1xf32>
    %cst_9 = arith.constant 0.000000e+00 : f32
    %33 = vector.broadcast %cst_9 : f32 to vector<8x1xf32>
    %34 = arith.maximumf %32, %33 : vector<8x1xf32>
    %35 = math.absf %32 : vector<8x1xf32>
    %cst_10 = arith.constant 0.000000e+00 : f32
    %36 = vector.broadcast %cst_10 : f32 to vector<8x1xf32>
    %37 = arith.subf %36, %35 : vector<8x1xf32>
    %38 = math.exp %37 : vector<8x1xf32>
    %39 = math.log1p %38 : vector<8x1xf32>
    %40 = arith.addf %34, %39 : vector<8x1xf32>
    %41 = vector.shape_cast %40 : vector<8x1xf32> to vector<1x8x1xf32>
    %cst_11 = arith.constant dense<0.000000e+00> : vector<1xf32>
    %42 = vector.multi_reduction <add>, %41, %cst_11 [1, 2] : vector<1x8x1xf32> to vector<1xf32>
    %43 = vector.shape_cast %42 : vector<1xf32> to vector<1x1x1xf32>
    %44 = vector.extract %43[0, 0, 0] : f32 from vector<1x1x1xf32>
    %cst_12 = arith.constant 8.000000e+00 : f32
    %45 = arith.divf %44, %cst_12 : f32
    %46 = arith.truncf %0 : vector<8x128xf32> to vector<8x128xbf16>
    %47 = arith.truncf %1 : vector<8x128xf32> to vector<8x128xbf16>
    %cst_13 = arith.constant dense<0.000000e+00> : vector<8x8xf32>
    %48 = tpu.matmul %46, %47, %cst_13 {dimension_numbers = #tpu.dot_dimension_numbers<[1], [1], [0], [0], [0, 0, 1, 0], [], []>} : vector<8x128xbf16>, vector<8x128xbf16>, vector<8x8xf32> -> vector<8x8xf32>
    %49 = vector.broadcast %20 : vector<8x1xf32> to vector<8x8xf32>
    %50 = arith.subf %48, %49 : vector<8x8xf32>
    %cst_14 = arith.constant -5.000000e+01 : f32
    %cst_15 = arith.constant 5.000000e+01 : f32
    %51 = vector.broadcast %cst_14 : f32 to vector<8x8xf32>
    %52 = arith.maximumf %51, %50 : vector<8x8xf32>
    %53 = vector.broadcast %cst_15 : f32 to vector<8x8xf32>
    %54 = arith.minimumf %53, %52 : vector<8x8xf32>
    %55 = math.exp %54 : vector<8x8xf32>
    %cst_16 = arith.constant dense<0.000000e+00> : vector<8xf32>
    %56 = vector.multi_reduction <add>, %55, %cst_16 [1] : vector<8x8xf32> to vector<8xf32>
    %57 = vector.shape_cast %56 : vector<8xf32> to vector<8x1xf32>
    %cst_17 = arith.constant 1.000000e+00 : f32
    %58 = vector.broadcast %cst_17 : f32 to vector<8x1xf32>
    %59 = arith.addf %57, %58 : vector<8x1xf32>
    %60 = math.log %59 : vector<8x1xf32>
    %61 = vector.shape_cast %60 : vector<8x1xf32> to vector<1x8x1xf32>
    %cst_18 = arith.constant dense<0.000000e+00> : vector<1xf32>
    %62 = vector.multi_reduction <add>, %61, %cst_18 [1, 2] : vector<1x8x1xf32> to vector<1xf32>
    %63 = vector.shape_cast %62 : vector<1xf32> to vector<1x1x1xf32>
    %64 = vector.extract %63[0, 0, 0] : f32 from vector<1x1x1xf32>
    %cst_19 = arith.constant 8.000000e+00 : f32
    %65 = arith.divf %64, %cst_19 : f32
    %66 = math.sqrt %4 : vector<8x1xf32>
    %67 = vector.shape_cast %66 : vector<8x1xf32> to vector<1x8x1xf32>
    %cst_20 = arith.constant dense<0.000000e+00> : vector<1xf32>
    %68 = vector.multi_reduction <add>, %67, %cst_20 [1, 2] : vector<1x8x1xf32> to vector<1xf32>
    %69 = vector.shape_cast %68 : vector<1xf32> to vector<1x1x1xf32>
    %70 = vector.extract %69[0, 0, 0] : f32 from vector<1x1x1xf32>
    %71 = math.sqrt %7 : vector<8x1xf32>
    %72 = vector.shape_cast %71 : vector<8x1xf32> to vector<1x8x1xf32>
    %cst_21 = arith.constant dense<0.000000e+00> : vector<1xf32>
    %73 = vector.multi_reduction <add>, %72, %cst_21 [1, 2] : vector<1x8x1xf32> to vector<1xf32>
    %74 = vector.shape_cast %73 : vector<1xf32> to vector<1x1x1xf32>
    %75 = vector.extract %74[0, 0, 0] : f32 from vector<1x1x1xf32>
    %76 = arith.addf %70, %75 : f32
    %cst_22 = arith.constant 1.600000e+01 : f32
    %77 = arith.divf %76, %cst_22 : f32
    %cst_23 = arith.constant 2.000000e+00 : f32
    %78 = arith.mulf %cst_23, %45 : f32
    %79 = arith.addf %65, %78 : f32
    %cst_24 = arith.constant 5.000000e-03 : f32
    %80 = arith.mulf %cst_24, %77 : f32
    %81 = arith.addf %79, %80 : f32
    %c0_25 = arith.constant 0 : index
    %c0_26 = arith.constant 0 : index
    %82 = memref.load %arg1[%c0_25, %c0_26] : memref<1x1xf32, #tpu.memory_space<smem>>
    memref.store %81, %arg1[%c0_25, %c0_26] : memref<1x1xf32, #tpu.memory_space<smem>>
    return
  }
}

</mosaic_0001>

<llo_original>
// kernel: tpu_custom_call.1
$region0: #{tpu_custom_call.1}
  #allocation0 [shape = 'u32[]', space=smem, size = 0x4, offset = 0x4, fixed_abs, tag = 'smem constant byte address 0x4 - core index']
  #allocation1 [shape = 'u32[144,128]{1,0:T(1,128)}', space=vmem, size = 0x12000, scoped, tag = 'internal scratch']
  %s0 = inlined_call_operand.hbm [shape: f32[16,128], index: 0, kind: input, shape index: {}]
  %s1 = inlined_call_operand.hbm [shape: f32[1,1], index: 1, kind: output, shape index: {}]
  %s2 = sld [smem:[#allocation0]]
  $region18: #{tpu_custom_call.1} parent=0
    _
  %s4 = ssub.s32 1, %s2
  %s5 = scalar_select 0, %s4, %s2
  $region1: #{tpu_custom_call.1} parent=0
    #allocation2 [shape = 'u8[8192]{0}', space=vmem, size = 0x2000, scoped, tag = 'input window, operand 0, single buffered']
    #allocation3 [shape = 's32[1]{0}', space=sflag, size = 0x4, scoped, tag = 'scoped memory for tpu_custom_call.1']
    #allocation4 [shape = 's32[1]{0}', space=sflag, size = 0x4, scoped, tag = 'scoped memory for tpu_custom_call.1']
    #allocation5 [shape = 'u8[512]{0}', space=smem, size = 0x200, scoped, tag = 'output window, operand 0, single buffered']
    %6 = vsyncpa [#allocation3], 0
    %7 = vsyncpa [#allocation4], 0
    // Predicated region
    $region2: #{tpu_custom_call.1} parent=1 // pred_check
      _
    $region3: #{tpu_custom_call.1} parent=1 // pred_check_branch
      %9 = sbr.rel (0) target = $region5
    $region4: #{tpu_custom_call.1} parent=1 // pred_region
      %s11 = ssub.s32 256, 256
      %12 = vsyncadd [#allocation3], %s11
      %s13 = sshll.u32 [#allocation2], 4
      %s14 = int_to_ptr.vmem [resolvable:$true] %s13
      %19 = dma.hbm_to_vmem [thread:$0]  %s0, 256, %s14, [#allocation3], 128, 128, 8
    $region5: #{tpu_custom_call.1} parent=1 // pred_fallthru
      _
    // Predicated region
    $region6: #{tpu_custom_call.1} parent=1 // pred_check
      _
    $region7: #{tpu_custom_call.1} parent=1 // pred_check_branch
      %21 = sbr.rel (0) target = $region9
    $region8: #{tpu_custom_call.1} parent=1 // pred_region
      %22 = dma.done [#allocation3], 256
    $region9: #{tpu_custom_call.1} parent=1 // pred_fallthru
      _
    %v24 = vld [vmem:[#allocation2] ss:$2 sm:$0xff]
    %s25 = scalar_lea.vmem [#allocation2], 1
    %v26 = vld [vmem:[%s25] ss:$2 sm:$0xff]
    %v27 = vmul.f32 %v24, %v24
    %28 = vadd.xlane.f32.xlu0 %v27
    %v29 = vpop.xlane.xlu0 %28
    %v30 = vmul.f32 %v26, %v26
    %31 = vadd.xlane.f32.xlu0 %v30
    %v32 = vpop.xlane.xlu0 %31
    %v33 = vmax.f32 %v29, 1e-24
    %v34 = vrsqrt.pop %v33
    %v35 = vmax.f32 %v32, 1e-24
    %v36 = vrsqrt.pop %v35
    %v37 = vmul.f32 %v24, %v34
    %v38 = vmul.f32 %v26, %v36
    %v39 = vmul.f32 %v24, %v26
    %40 = vadd.xlane.f32.xlu0 %v39
    %v41 = vpop.xlane.xlu0 %40
    %v42 = vrot.slane %v38, 1
    %v43 = vadd.f32 %v37, %v38
    %v44 = vmul.f32 %v43, %v42
    %45 = vadd.xlane.f32.xlu0 %v44
    %v46 = vpop.xlane.xlu0 %45
    %v47 = vmul.f32 %v46, 4.0
    %v48 = vmul.f32 %v41, 4.0
    %v49 = vmul.f32 %v48, %v34
    %v50 = vmul.f32 %v49, %v36
    %v51 = vsub.f32 %v47, %v50
    %v52 = vmax.f32 %v51, 0.0
    %v53 = vand.u32 2147483647, %v51
    %v54 = vsub.f32 0.0, %v53
    %v55 = vmul.f32 %v54, 1.442695
    %v56 = vpow.pop %v55
    %v57 = vadd.f32 %v56, 1.0
    %v58 = vlog2.pop %v57
    %v59 = vmul.f32 %v58, 0.6931472
    %v60 = vmul.f32 -0.5, %v56
    %v61 = vadd.f32 %v60, 1.0
    %v62 = vmul.f32 %v61, %v56
    %v63 = vand.u32 2147483647, %v56
    %vm64 = vcmp.lt.f32.partialorder %v63, 0.0004427343
    %v65 = vsel %vm64, %v62, %v59
    %v66 = vadd.f32 %v52, %v65
    %vm67 = vcmask 7168
    %v68 = vsel %vm67, %v66, 0.0
    %69 = vadd.xlane.f32.xlu0 %v68
    %v70 = vpop.xlane.xlu0 %69
    %v71 = vrot.slane %v70, 4
    %v72 = vadd.f32 %v70, %v71
    %v73 = vrot.slane %v72, 2
    %v74 = vadd.f32 %v72, %v73
    %v75 = vrot.slane %v74, 1
    %v76 = vadd.f32 %v74, %v75
    %s77 = vtos %v76
    %v78 = vrcp.pop 8.0
    %s79 = vtos %v78
    %s80 = smul.f32 %s77, %s79
    %v81 = vpack.c.bf16 %v24, %v24
    %v82 = vpack.c.bf16 %v26, %v26
    %83 = vmatprep.subr.bf16.mxu0 0
    %84 = vmatpush1.bf16.xpose.msra.mxu0 %v82
    %85 = vmatprep.subr.bf16.mxu0 0
    %86 = vmatpush1.bf16.xpose.msra.mxu0 0
    %87 = vmatprep.subr.bf16.mxu0 0
    %88 = vmatpush1.bf16.xpose.msra.mxu0 0
    %89 = vmatprep.subr.bf16.mxu0 0
    %90 = vmatpush1.bf16.xpose.msra.mxu0 0
    %91 = vmatprep.subr.bf16.mxu0 0
    %92 = vmatpush1.bf16.xpose.msra.mxu0 0
    %93 = vmatprep.subr.bf16.mxu0 0
    %94 = vmatpush1.bf16.xpose.msra.mxu0 0
    %95 = vmatprep.subr.bf16.mxu0 0
    %96 = vmatpush1.bf16.xpose.msra.mxu0 0
    %97 = vmatprep.subr.bf16.mxu0 0
    %98 = vmatpush1.bf16.xpose.msra.mxu0 0
    %99 = vmatprep.subr.bf16.mxu0 0
    %100 = vmatpush1.bf16.xpose.msra.mxu0 0
    %101 = vmatprep.subr.bf16.mxu0 0
    %102 = vmatpush1.bf16.xpose.msra.mxu0 0
    %103 = vmatprep.subr.bf16.mxu0 0
    %104 = vmatpush1.bf16.xpose.msra.mxu0 0
    %105 = vmatprep.subr.bf16.mxu0 0
    %106 = vmatpush1.bf16.xpose.msra.mxu0 0
    %107 = vmatprep.subr.bf16.mxu0 0
    %108 = vmatpush1.bf16.xpose.msra.mxu0 0
    %109 = vmatprep.subr.bf16.mxu0 0
    %110 = vmatpush1.bf16.xpose.msra.mxu0 0
    %111 = vmatprep.subr.bf16.mxu0 0
    %112 = vmatpush1.bf16.xpose.msra.mxu0 0
    %113 = vmatprep.subr.bf16.mxu0 0
    %114 = vmatpush1.bf16.xpose.msra.mxu0 0
    %115 = vmatprep.mubr.bf16.mxu0 0
    %116 = vmatmul.mubr.bf16.gmra.mrb[0].mxu0 %v81
    %v117 = vpop.f32.mrb[0].mxu0
    %v118 = vadd.f32 0.0, %v117
    %v119 = vpop.f32.mrb[0].mxu0
    %v120 = vpop.f32.mrb[0].mxu0
    %v121 = vpop.f32.mrb[0].mxu0
    %122 = vdwg.mxu0
    %v123 = vsub.f32 %v118, %v41
    %v124 = vmax.f32 %v123, -50.0
    %v125 = vmin.f32 %v124, 50.0
    %v126 = vmul.f32 %v125, 1.442695
    %v127 = vpow.pop %v126
    %vm128 = vcmask 64512
    %v129 = vsel %vm128, %v127, 0.0
    %130 = vadd.xlane.f32.xlu0 %v129
    %v131 = vpop.xlane.xlu0 %130
    %v132 = vadd.f32 %v131, 1.0
    %v133 = vlog2.pop %v132
    %v134 = vmul.f32 %v133, 0.6931472
    %v135 = vsel %vm67, %v134, 0.0
    %136 = vadd.xlane.f32.xlu0 %v135
    %v137 = vpop.xlane.xlu0 %136
    %v138 = vrot.slane %v137, 4
    %v139 = vadd.f32 %v137, %v138
    %v140 = vrot.slane %v139, 2
    %v141 = vadd.f32 %v139, %v140
    %v142 = vrot.slane %v141, 1
    %v143 = vadd.f32 %v141, %v142
    %s144 = vtos %v143
    %v145 = vrcp.pop 8.0
    %s146 = vtos %v145
    %s147 = smul.f32 %s144, %s146
    %v148 = vrsqrt.pop %v29
    %v149 = vmul.f32 %v29, %v148
    %vm150 = vcmp.eq.f32.partialorder %v29, inf
    %v151 = vsel %vm150, %v29, %v149
    %vm152 = vcmp.eq.f32.partialorder %v29, 0.0
    %v153 = vand.u32 %v29, 2147483648
    %v154 = vsel %vm152, %v153, %v151
    %v155 = vsel %vm67, %v154, 0.0
    %156 = vadd.xlane.f32.xlu0 %v155
    %v157 = vpop.xlane.xlu0 %156
    %v158 = vrot.slane %v157, 4
    %v159 = vadd.f32 %v157, %v158
    %v160 = vrot.slane %v159, 2
    %v161 = vadd.f32 %v159, %v160
    %v162 = vrot.slane %v161, 1
    %v163 = vadd.f32 %v161, %v162
    %s164 = vtos %v163
    %v165 = vrsqrt.pop %v32
    %v166 = vmul.f32 %v32, %v165
    %vm167 = vcmp.eq.f32.partialorder %v32, inf
    %v168 = vsel %vm167, %v32, %v166
    %vm169 = vcmp.eq.f32.partialorder %v32, 0.0
    %v170 = vand.u32 %v32, 2147483648
    %v171 = vsel %vm169, %v170, %v168
    %v172 = vsel %vm67, %v171, 0.0
    %173 = vadd.xlane.f32.xlu0 %v172
    %v174 = vpop.xlane.xlu0 %173
    %v175 = vrot.slane %v174, 4
    %v176 = vadd.f32 %v174, %v175
    %v177 = vrot.slane %v176, 2
    %v178 = vadd.f32 %v176, %v177
    %v179 = vrot.slane %v178, 1
    %v180 = vadd.f32 %v178, %v179
    %s181 = vtos %v180
    %s182 = sadd.f32 %s164, %s181
    %v183 = vrcp.pop 16.0
    %s184 = vtos %v183
    %s185 = smul.f32 %s182, %s184
    %s186 = smul.f32 %s80, 2.0
    %s187 = sadd.f32 %s147, %s186
    %s188 = smul.f32 %s185, 0.005
    %s189 = sadd.f32 %s187, %s188
    %s190 = scalar_lea.smem [#allocation5], 0
    %191 = sst [smem:[%s190]] %s189
    // Predicated region
    $region10: #{tpu_custom_call.1} parent=1 // pred_check
      _
    $region11: #{tpu_custom_call.1} parent=1 // pred_check_branch
      %193 = sbr.rel (0) target = $region13
    $region12: #{tpu_custom_call.1} parent=1 // pred_region
      %s195 = ssub.s32 16, 16
      %196 = vsyncadd [#allocation4], %s195
      %199 = dma.smem_to_hbm [#allocation5], 16, %s1, [#allocation4]
    $region13: #{tpu_custom_call.1} parent=1 // pred_fallthru
      _
    // Predicated region
    $region14: #{tpu_custom_call.1} parent=1 // pred_check
      _
    $region15: #{tpu_custom_call.1} parent=1 // pred_check_branch
      %201 = sbr.rel (0) target = $region17
    $region16: #{tpu_custom_call.1} parent=1 // pred_region
      %202 = dma.done [#allocation4], 16
    $region17: #{tpu_custom_call.1} parent=1 // pred_fallthru
      _
    %203 = sfence
    %204 = vsyncpa [#allocation3], 1
    %205 = vsyncpa [#allocation4], 1

</llo_original>
